<compile_context>
chip_gen: v6e
topology: v6e:2x2x1
jax: 0.10.0
libtpu: 0.0.40
codegen_flags: <defaults>
</compile_context>

<pallas_src>
import functools

import jax
import jax.numpy as jnp
from jax.experimental import pallas as pl
from jax.experimental.pallas import tpu as pltpu


def _layernorm_kernel(x_ref, w_ref, b_ref, o_ref, *, eps: float):
    # x_ref: (tile_rows, H); w_ref/b_ref: (1, H); o_ref: (tile_rows, H)
    x = x_ref[...].astype(jnp.float32)
    mean = jnp.mean(x, axis=-1, keepdims=True)
    xc = x - mean                      # `x` is dead past this point -> buffer reuse
    var = jnp.mean(xc * xc, axis=-1, keepdims=True)  # biased variance, like F.layer_norm
    inv = jax.lax.rsqrt(var + eps)
    w = w_ref[...].astype(jnp.float32)
    b = b_ref[...].astype(jnp.float32)
    o_ref[...] = (xc * inv * w + b).astype(o_ref.dtype)


def _round_up(x: int, m: int) -> int:
    return ((x + m - 1) // m) * m


# HBM cap: ~16 MiB of input bytes per grid step keeps the ~0.35 us per-step
# overhead <5% even at v7x's ~3.2 TB/s HBM bandwidth.
_TARGET_BLOCK_BYTES = 16 * 1024 * 1024


def _vmem_budgets() -> tuple[int, int]:
    """Per-generation (scoped-VMEM request, tile-sizing budget) in bytes."""
    vmem_bytes = 0
    try:
        info = pltpu.get_tpu_info()
        for name in ("vmem_capacity_bytes", "vmem_bytes", "vmem_size_bytes"):
            v = getattr(info, name, None)
            if v:
                vmem_bytes = int(v)
                break
    except Exception:
        vmem_bytes = 0
    if vmem_bytes <= 0:
        vmem_bytes = 64 * 1024 * 1024  # assume the smallest (v7x) when unknown
    # v7x  (64 MiB physical): limit = 40 MiB, budget = 28 MiB
    # v5e/v6e (128 MiB):      limit = 96 MiB, budget = 72 MiB
    limit = min(96 * 1024 * 1024, max(32 * 1024 * 1024, vmem_bytes - 24 * 1024 * 1024))
    budget = min(limit - 12 * 1024 * 1024, (limit * 3) // 4)
    return int(limit), int(budget)


def _choose_tile_rows(rows: int, H: int, itemsize: int, tile_budget_bytes: int) -> int:
    """Largest sublane-aligned row tile under the VMEM budget and byte target."""
    # Sublane packing: 8 rows for 32-bit, 16 for bf16/f16, 32 for 8-bit dtypes.
    sub = max(8, 32 // max(itemsize, 1))
    # VMEM cap: double-buffered input + output blocks (storage dtype) plus
    # ~2 f32 working copies (kernel reuses the upcast buffer; the 2x is
    # deliberate headroom for Mosaic temporaries so v7x always compiles).
    bytes_per_row = H * (4 * itemsize + 2 * 4)
    vmem_rows = max(sub, tile_budget_bytes // max(bytes_per_row, 1))
    # Byte-based cap (replaces the old fixed 1024-row cap that starved small H).
    byte_rows = max(sub, _TARGET_BLOCK_BYTES // max(H * itemsize, 1))
    tile = max(1, min(vmem_rows, byte_rows, rows))
    # Keep >= 2 grid steps (and an even step count) so the "parallel" row axis
    # can be balanced across v7x's two TensorCores.
    if rows > 2 * sub:
        steps = max(2, pl.cdiv(rows, tile))
        if steps % 2:
            steps += 1
        tile = min(tile, pl.cdiv(rows, steps))
    # Sublane alignment LAST, rounding UP: Pallas masks the ragged last block,
    # and rows are independent so masked rows never contaminate real output.
    return int(_round_up(tile, sub))


def layernorm_pallas(x: jax.Array, weight: jax.Array, bias: jax.Array,
                     eps: float = 1e-5, tile_rows: int | None = None) -> jax.Array:
    """LayerNorm over the last axis of x. x: [..., H], weight/bias: [H]."""
    orig_shape = x.shape
    H = orig_shape[-1]
    rows = 1
    for d in orig_shape[:-1]:
        rows *= d
    x2 = x.reshape(rows, H)
    itemsize = x2.dtype.itemsize

    vmem_limit, tile_budget = _vmem_budgets()
    if tile_rows is None:
        tile_rows = _choose_tile_rows(rows, H, itemsize, tile_budget)

    # NOTE: real hidden sizes are multiples of 128, keeping the output
    # lane-dense (unmasked stores).  The tiny demo H below is correctness-only.
    w2 = weight.reshape(1, H)
    b2 = bias.reshape(1, H)

    # No wrapper-side padding: Pallas masks the ragged last block; rows are
    # independent so out-of-range rows are computed-but-never-stored garbage.
    grid = (pl.cdiv(rows, tile_rows),)

    cost = pl.CostEstimate(
        flops=8 * rows * H,
        transcendentals=rows,
        bytes_accessed=2 * rows * H * itemsize + 2 * H * weight.dtype.itemsize,
    )

    out = pl.pallas_call(
        functools.partial(_layernorm_kernel, eps=eps),
        out_shape=jax.ShapeDtypeStruct((rows, H), x.dtype),
        grid_spec=pltpu.PrefetchScalarGridSpec(
            num_scalar_prefetch=0,
            grid=grid,
            in_specs=[
                pl.BlockSpec((tile_rows, H), lambda i: (i, 0)),
                # constant block index -> weight/bias stay VMEM-resident across steps
                pl.BlockSpec((1, H), lambda i: (0, 0)),
                pl.BlockSpec((1, H), lambda i: (0, 0)),
            ],
            out_specs=pl.BlockSpec((tile_rows, H), lambda i: (i, 0)),
        ),
        compiler_params=pltpu.CompilerParams(
            dimension_semantics=("parallel",),
            vmem_limit_bytes=vmem_limit,
        ),
        cost_estimate=cost,
    )(x2, w2, b2)

    return out.reshape(orig_shape)


def layernorm_ref(x, weight, bias, eps=1e-5):
    xf = x.astype(jnp.float32)
    mean = jnp.mean(xf, axis=-1, keepdims=True)
    var = jnp.mean((xf - mean) ** 2, axis=-1, keepdims=True)
    y = (xf - mean) * jax.lax.rsqrt(var + eps)
    return (y * weight.astype(jnp.float32) + bias.astype(jnp.float32)).astype(x.dtype)


if __name__ == "__main__":
    # Module __init__: normalized_shape = hidden; weight = ones(H), bias = zeros(H)
    batch, seq, hidden = 2, 8, 32
    eps = 1e-5  # config.layernorm_epsilon default

    key = jax.random.PRNGKey(0)
    kx, kw, kb = jax.random.split(key, 3)
    x = jax.random.normal(kx, (batch, seq, hidden), dtype=jnp.float32)

    # 1) as-initialized parameters (ones / zeros)
    weight = jnp.ones((hidden,), dtype=jnp.float32)
    bias = jnp.zeros((hidden,), dtype=jnp.float32)
    out = jax.block_until_ready(layernorm_pallas(x, weight, bias, eps=eps))
    ref = layernorm_ref(x, weight, bias, eps=eps)
    assert out.shape == x.shape and out.dtype == x.dtype
    assert jnp.allclose(out, ref, atol=1e-5, rtol=1e-5), "mismatch vs reference (init params)"

    # 2) non-trivial affine parameters (exercise the scale/shift path)
    weight2 = jax.random.normal(kw, (hidden,), dtype=jnp.float32)
    bias2 = jax.random.normal(kb, (hidden,), dtype=jnp.float32)
    out2 = jax.block_until_ready(layernorm_pallas(x, weight2, bias2, eps=eps))
    ref2 = layernorm_ref(x, weight2, bias2, eps=eps)
    assert jnp.allclose(out2, ref2, atol=1e-5, rtol=1e-5), "mismatch vs reference (random params)"

    # 3) bf16 input (exercises the 16-row sublane-alignment path of the tiler)
    x_bf16 = x.astype(jnp.bfloat16)
    out3 = jax.block_until_ready(layernorm_pallas(x_bf16, weight2, bias2, eps=eps))
    ref3 = layernorm_ref(x_bf16, weight2, bias2, eps=eps)
    assert out3.dtype == jnp.bfloat16
    assert jnp.allclose(out3.astype(jnp.float32), ref3.astype(jnp.float32),
                        atol=3e-2, rtol=3e-2), "mismatch vs reference (bf16)"

    # TODO(synk): umup_forward scaling multipliers and the sequence-parallel
    # gather are training/distributed-only paths with no standalone Pallas
    # equivalent here.
    print("KERNEL_OK")
</pallas_src>

<mosaic_0001>
module attributes {stable_mosaic.version = 11 : i64} {
  func.func @_layernorm_kernel(%arg0: i32, %arg1: memref<16x32xf32, #tpu.memory_space<vmem>>, %arg2: memref<1x32xf32, #tpu.memory_space<vmem>>, %arg3: memref<1x32xf32, #tpu.memory_space<vmem>>, %arg4: memref<16x32xf32, #tpu.memory_space<vmem>>) attributes {dimension_semantics = [#tpu.dimension_semantics<parallel>], iteration_bounds = array<i64: 1>, scalar_prefetch = 0 : i64, scratch_operands = 0 : i64, tpu.core_type = #tpu.core_type<tc>, window_params = [{transform_indices = @transform_0, window_bounds = array<i64: 16, 32>}, {pipeline_mode = #tpu.pipeline_mode<synchronous>, transform_indices = @transform_1, window_bounds = array<i64: 1, 32>}, {pipeline_mode = #tpu.pipeline_mode<synchronous>, transform_indices = @transform_2, window_bounds = array<i64: 1, 32>}, {transform_indices = @transform_3, window_bounds = array<i64: 16, 32>}]} {
    %c0 = arith.constant 0 : index
    %c0_0 = arith.constant 0 : index
    %0 = vector.load %arg1[%c0, %c0_0] : memref<16x32xf32, #tpu.memory_space<vmem>>, vector<16x32xf32>
    %cst = arith.constant dense<0.000000e+00> : vector<16xf32>
    %1 = vector.multi_reduction <add>, %0, %cst [1] : vector<16x32xf32> to vector<16xf32>
    %2 = vector.shape_cast %1 : vector<16xf32> to vector<16x1xf32>
    %cst_1 = arith.constant 3.200000e+01 : f32
    %3 = vector.broadcast %cst_1 : f32 to vector<16x1xf32>
    %4 = arith.divf %2, %3 : vector<16x1xf32>
    %5 = vector.broadcast %4 : vector<16x1xf32> to vector<16x32xf32>
    %6 = arith.subf %0, %5 : vector<16x32xf32>
    %7 = arith.mulf %6, %6 : vector<16x32xf32>
    %cst_2 = arith.constant dense<0.000000e+00> : vector<16xf32>
    %8 = vector.multi_reduction <add>, %7, %cst_2 [1] : vector<16x32xf32> to vector<16xf32>
    %9 = vector.shape_cast %8 : vector<16xf32> to vector<16x1xf32>
    %cst_3 = arith.constant 3.200000e+01 : f32
    %10 = vector.broadcast %cst_3 : f32 to vector<16x1xf32>
    %11 = arith.divf %9, %10 : vector<16x1xf32>
    %cst_4 = arith.constant 9.99999974E-6 : f32
    %12 = vector.broadcast %cst_4 : f32 to vector<16x1xf32>
    %13 = arith.addf %11, %12 : vector<16x1xf32>
    %14 = math.rsqrt %13 : vector<16x1xf32>
    %c0_5 = arith.constant 0 : index
    %c0_6 = arith.constant 0 : index
    %15 = vector.load %arg2[%c0_5, %c0_6] : memref<1x32xf32, #tpu.memory_space<vmem>>, vector<1x32xf32>
    %c0_7 = arith.constant 0 : index
    %c0_8 = arith.constant 0 : index
    %16 = vector.load %arg3[%c0_7, %c0_8] : memref<1x32xf32, #tpu.memory_space<vmem>>, vector<1x32xf32>
    %17 = vector.broadcast %14 : vector<16x1xf32> to vector<16x32xf32>
    %18 = arith.mulf %6, %17 : vector<16x32xf32>
    %19 = vector.broadcast %15 : vector<1x32xf32> to vector<16x32xf32>
    %20 = arith.mulf %18, %19 : vector<16x32xf32>
    %21 = vector.broadcast %16 : vector<1x32xf32> to vector<16x32xf32>
    %22 = arith.addf %20, %21 : vector<16x32xf32>
    %c0_9 = arith.constant 0 : index
    %c0_10 = arith.constant 0 : index
    %23 = vector.load %arg4[%c0_9, %c0_10] : memref<16x32xf32, #tpu.memory_space<vmem>>, vector<16x32xf32>
    tpu.vector_store %arg4[%c0_9, %c0_10], %22 {strides = array<i32>} : memref<16x32xf32, #tpu.memory_space<vmem>>, vector<16x32xf32>,
    return
  }
  func.func @transform_0(%arg0: i32) -> (i32, i32) {
    %c0_i32 = arith.constant 0 : i32
    %c0_i32_0 = arith.constant 0 : i32
    return %arg0, %c0_i32 : i32, i32
  }
  func.func @transform_1(%arg0: i32) -> (i32, i32) {
    %c0_i32 = arith.constant 0 : i32
    %c0_i32_0 = arith.constant 0 : i32
    %c0_i32_1 = arith.constant 0 : i32
    return %c0_i32, %c0_i32_0 : i32, i32
  }
  func.func @transform_2(%arg0: i32) -> (i32, i32) {
    %c0_i32 = arith.constant 0 : i32
    %c0_i32_0 = arith.constant 0 : i32
    %c0_i32_1 = arith.constant 0 : i32
    return %c0_i32, %c0_i32_0 : i32, i32
  }
  func.func @transform_3(%arg0: i32) -> (i32, i32) {
    %c0_i32 = arith.constant 0 : i32
    %c0_i32_0 = arith.constant 0 : i32
    return %arg0, %c0_i32 : i32, i32
  }
}

</mosaic_0001>

<llo_original>
// kernel: tpu_custom_call.1
$region0: #{tpu_custom_call.1}
  #allocation0 [shape = 'u32[]', space=smem, size = 0x4, offset = 0x4, fixed_abs, tag = 'smem constant byte address 0x4 - core index']
  #allocation1 [shape = 'u32[144,128]{1,0:T(1,128)}', space=vmem, size = 0x12000, scoped, tag = 'internal scratch']
  %s0 = inlined_call_operand.hbm [shape: f32[16,32], index: 0, kind: input, shape index: {}]
  %s1 = inlined_call_operand.vmem [shape: f32[1,32], index: 1, kind: input, shape index: {}]
  %s2 = inlined_call_operand.vmem [shape: f32[1,32], index: 2, kind: input, shape index: {}]
  %s3 = inlined_call_operand.hbm [shape: f32[16,32], index: 3, kind: output, shape index: {}]
  %s4 = sld [smem:[#allocation0]]
  $region26: #{tpu_custom_call.1} parent=0
    _
  %s6 = ssub.s32 1, %s4
  %s7 = scalar_select 0, %s6, %s4
  $region1: #{tpu_custom_call.1} parent=0
    #allocation2 [shape = 'u8[8192]{0}', space=vmem, size = 0x2000, scoped, tag = 'input window, operand 0, single buffered']
    #allocation3 [shape = 's32[1]{0}', space=sflag, size = 0x4, scoped, tag = 'scoped memory for tpu_custom_call.1']
    #allocation4 [shape = 's32[1]{0}', space=sflag, size = 0x4, scoped, tag = 'scoped memory for tpu_custom_call.1']
    #allocation5 [shape = 'u8[8192]{0}', space=vmem, size = 0x2000, scoped, tag = 'output window, operand 0, single buffered']
    %8 = vsyncpa [#allocation3], 0
    %9 = vsyncpa [#allocation4], 0
    // Predicated region
    $region2: #{tpu_custom_call.1} parent=1 // pred_check
      _
    $region3: #{tpu_custom_call.1} parent=1 // pred_check_branch
      %11 = sbr.rel (0) target = $region5
    $region4: #{tpu_custom_call.1} parent=1 // pred_region
      %s13 = ssub.s32 256, 256
      %14 = vsyncadd [#allocation3], %s13
      %s15 = sshll.u32 [#allocation2], 4
      %s16 = int_to_ptr.vmem [resolvable:$true] %s15
      %21 = dma.hbm_to_vmem [thread:$0]  %s0, 256, %s16, [#allocation3], 128, 128, 8
    $region5: #{tpu_custom_call.1} parent=1 // pred_fallthru
      _
    // Predicated region
    $region6: #{tpu_custom_call.1} parent=1 // pred_check
      _
    $region7: #{tpu_custom_call.1} parent=1 // pred_check_branch
      %23 = sbr.rel (0) target = $region9
    $region8: #{tpu_custom_call.1} parent=1 // pred_region
      _
    $region9: #{tpu_custom_call.1} parent=1 // pred_fallthru
      _
    // Predicated region
    $region10: #{tpu_custom_call.1} parent=1 // pred_check
      _
    $region11: #{tpu_custom_call.1} parent=1 // pred_check_branch
      %25 = sbr.rel (0) target = $region13
    $region12: #{tpu_custom_call.1} parent=1 // pred_region
      _
    $region13: #{tpu_custom_call.1} parent=1 // pred_fallthru
      _
    // Predicated region
    $region14: #{tpu_custom_call.1} parent=1 // pred_check
      _
    $region15: #{tpu_custom_call.1} parent=1 // pred_check_branch
      %27 = sbr.rel (0) target = $region17
    $region16: #{tpu_custom_call.1} parent=1 // pred_region
      %28 = dma.done [#allocation3], 256
    $region17: #{tpu_custom_call.1} parent=1 // pred_fallthru
      _
    %v29 = vld [vmem:[#allocation2] sm:$0xff]
    %v30 = vld [vmem:[#allocation2 + $0x8] sm:$0xff]
    %vm31 = vcmask 261120
    %v32 = vsel %vm31, %v29, 0.0
    %33 = vadd.xlane.f32.xlu0 %v32
    %v34 = vpop.xlane.xlu0 %33
    %v35 = vsel %vm31, %v30, 0.0
    %36 = vadd.xlane.f32.xlu0 %v35
    %v37 = vpop.xlane.xlu0 %36
    %v38 = vrcp.pop 32.0
    %v39 = vmul.f32 %v34, %v38
    %v40 = vmul.f32 %v37, %v38
    %v41 = vsub.f32 %v29, %v39
    %v42 = vsub.f32 %v30, %v40
    %v43 = vmul.f32 %v41, %v41
    %v44 = vmul.f32 %v42, %v42
    %v45 = vsel %vm31, %v43, 0.0
    %46 = vadd.xlane.f32.xlu0 %v45
    %v47 = vpop.xlane.xlu0 %46
    %v48 = vsel %vm31, %v44, 0.0
    %49 = vadd.xlane.f32.xlu0 %v48
    %v50 = vpop.xlane.xlu0 %49
    %v51 = vmul.f32 %v47, %v38
    %v52 = vmul.f32 %v50, %v38
    %v53 = vadd.f32 %v51, 1e-05
    %v54 = vadd.f32 %v52, 1e-05
    %v55 = vrsqrt.pop %v53
    %v56 = vrsqrt.pop %v54
    %v57 = vld [vmem:[%s1] sm:$0x1]
    %v58 = vld [vmem:[%s2] sm:$0x1]
    %v59 = vmul.f32 %v41, %v55
    %v60 = vmul.f32 %v42, %v56
    %v62 = vlaneseq
    %v63 = vshrl.u32 %v62, 7
    %v64 = vsub.s32 0, %v63
    %v65 = vrot.slane %v57, %v64
    %v67 = vmul.f32 %v59, %v65
    %v68 = vmul.f32 %v60, %v65
    %v70 = vlaneseq
    %v71 = vshrl.u32 %v70, 7
    %v72 = vsub.s32 0, %v71
    %v73 = vrot.slane %v58, %v72
    %v75 = vadd.f32 %v67, %v73
    %v76 = vadd.f32 %v68, %v73
    %77 = vst.msk [vmem:[#allocation5] sm:$0xff] %vm31, %v75
    %78 = vst.msk [vmem:[#allocation5 + $0x8] sm:$0xff] %vm31, %v76
    // Predicated region
    $region18: #{tpu_custom_call.1} parent=1 // pred_check
      _
    $region19: #{tpu_custom_call.1} parent=1 // pred_check_branch
      %80 = sbr.rel (0) target = $region21
    $region20: #{tpu_custom_call.1} parent=1 // pred_region
      %s82 = ssub.s32 256, 256
      %83 = vsyncadd [#allocation4], %s82
      %s84 = sshll.u32 [#allocation5], 4
      %s85 = int_to_ptr.vmem [resolvable:$true] %s84
      %90 = dma.vmem_to_hbm [thread:$0]  %s85, 256, %s3, [#allocation4], 128, 128, 8
    $region21: #{tpu_custom_call.1} parent=1 // pred_fallthru
      _
    // Predicated region
    $region22: #{tpu_custom_call.1} parent=1 // pred_check
      _
    $region23: #{tpu_custom_call.1} parent=1 // pred_check_branch
      %92 = sbr.rel (0) target = $region25
    $region24: #{tpu_custom_call.1} parent=1 // pred_region
      %93 = dma.done [#allocation4], 256
    $region25: #{tpu_custom_call.1} parent=1 // pred_fallthru
      _
    %94 = vsyncpa [#allocation3], 1
    %95 = vsyncpa [#allocation4], 1

</llo_original>
